<compile_context>
chip_gen: v5e
topology: v5e:2x2
jax: 0.10.0
libtpu: 0.0.40
codegen_flags: <defaults>
</compile_context>

<pallas_src>
import jax
import jax.numpy as jnp
from jax.experimental import pallas as pl
from jax.experimental.pallas import tpu as pltpu

LANES = 128          # vreg lane width (fast axis)
SUBLANES = 8         # vreg sublane count (slow axis, f32)

# ~8 MiB of input per grid step: per-step DMA/grid overhead (~0.35 us) becomes
# negligible even at v7x's 3.2 TB/s, while double-buffered in+out traffic
# (4 x 8 MiB = 32 MiB) stays inside the 48 MiB VMEM request below (and inside
# v7x's 64 MiB physical VMEM).
_TARGET_BLOCK_BYTES = 8 << 20
# Never shrink a block below ~256 KiB when splitting for 2-TC parallelism.
_MIN_BLOCK_BYTES = 256 << 10
# 48 MiB scoped VMEM: < 64 MiB physical on v7x, far under 128 MiB on v5e/v6e.
_VMEM_LIMIT_BYTES = 48 * 1024 * 1024


def _round_up(x: int, m: int) -> int:
    return ((x + m - 1) // m) * m


def _round_down(x: int, m: int) -> int:
    return (x // m) * m


def _choose_block_rows(rows: int, itemsize: int) -> int:
    """Row tile sized in bytes, rounded to a full-vreg sublane multiple for the dtype."""
    # Full-vreg sublane granularity: 8 for f32, 16 for bf16, 32 for int8/fp8.
    sub = SUBLANES * max(1, 4 // itemsize)
    tr = max(sub, _round_down(_TARGET_BLOCK_BYTES // (LANES * itemsize), sub))
    min_tr = max(sub, _round_down(_MIN_BLOCK_BYTES // (LANES * itemsize), sub))
    rows_up = _round_up(rows, sub)
    # If the whole slab fits in one target block but is big enough to split,
    # use two blocks so dimension_semantics=("parallel",) can shard the row
    # axis across v7x's two TensorCores. Extra cost on single-TC v5e/v6e is one
    # ~0.35 us grid step — negligible at >=256 KiB per block.
    if rows_up <= tr and rows_up >= 2 * min_tr:
        tr = _round_up(pl.cdiv(rows_up, 2), sub)
    tr = min(tr, rows_up)
    return max(tr, sub)


def _pswish_kernel(beta_ref, x_ref, o_ref):
    # beta_ref: SMEM scalar (shape (1,)); x_ref / o_ref: VMEM tiles (tr, 128).
    beta = beta_ref[0]
    xf = x_ref[...].astype(jnp.float32)
    # Single-transcendental sigmoid: sigmoid(z) = 0.5*(1 + tanh(0.5*z)).
    # One EUP op per element (tanh), exact math (no approx reciprocal); compute
    # stays fully hidden under the HBM stream on every generation.
    # NOTE: the ragged last grid block reads garbage rows past the array edge;
    # tanh of garbage is finite, those lanes are never written back, and no op
    # here reduces across rows — safe by construction.
    y = 0.5 * xf * (1.0 + jnp.tanh(0.5 * beta * xf))
    o_ref[...] = y.astype(o_ref.dtype)


def _pswish_tail_jax(x_tail: jax.Array, beta0: jax.Array) -> jax.Array:
    xf = x_tail.astype(jnp.float32)
    return (0.5 * xf * (1.0 + jnp.tanh(0.5 * beta0 * xf))).astype(x_tail.dtype)


def pswish(x: jax.Array, beta: jax.Array) -> jax.Array:
    """Parametric swish. x: any shape (e.g. NCHW). beta: scalar / shape-(1,) param."""
    orig_shape = x.shape
    orig_dtype = x.dtype
    n = x.size
    if n == 0:
        return x

    beta_arr = jnp.asarray(beta, jnp.float32).reshape(1)
    x_flat = x.reshape(-1)

    # Lane-aligned prefix goes through the kernel; the <128-element tail (if
    # any) is handled in plain JAX. This avoids the old pad+slice path, which
    # cost two extra full-array HBM passes on misaligned sizes.
    n_aligned = (n // LANES) * LANES
    tail = n - n_aligned

    if n_aligned == 0:
        # Entire input is smaller than one lane row — plain JAX is optimal.
        return _pswish_tail_jax(x_flat, beta_arr[0]).reshape(orig_shape)

    rows = n_aligned // LANES
    x2d = x_flat[:n_aligned].reshape(rows, LANES)

    itemsize = jnp.dtype(orig_dtype).itemsize
    tr = _choose_block_rows(rows, itemsize)
    grid = (pl.cdiv(rows, tr),)  # ragged last block is safe for an elementwise op

    out2d = pl.pallas_call(
        _pswish_kernel,
        out_shape=jax.ShapeDtypeStruct((rows, LANES), orig_dtype),
        grid_spec=pltpu.PrefetchScalarGridSpec(
            num_scalar_prefetch=0,
            grid=grid,
            in_specs=[
                pl.BlockSpec(memory_space=pltpu.SMEM),        # beta scalar
                pl.BlockSpec((tr, LANES), lambda i: (i, 0)),  # x tile
            ],
            out_specs=pl.BlockSpec((tr, LANES), lambda i: (i, 0)),
        ),
        compiler_params=pltpu.CompilerParams(
            dimension_semantics=("parallel",),
            vmem_limit_bytes=_VMEM_LIMIT_BYTES,
        ),
    )(beta_arr, x2d)

    out_flat = out2d.reshape(-1)
    if tail:
        # TODO(synk): the concatenate still costs one extra output pass on
        # misaligned sizes; only the kernel + tail compute are roofline-clean.
        y_tail = _pswish_tail_jax(x_flat[n_aligned:], beta_arr[0])
        out_flat = jnp.concatenate([out_flat, y_tail])
    return out_flat.reshape(orig_shape)


if __name__ == "__main__":
    key = jax.random.PRNGKey(0)
    # NCHW input, consistent with a PyTorch activation used after a conv.
    x = jax.random.normal(key, (2, 4, 16, 16), dtype=jnp.float32)
    # Matches nn.Parameter(torch.Tensor([1.0])).
    beta = jnp.array([1.0], dtype=jnp.float32)

    y = jax.block_until_ready(pswish(x, beta))
    y_ref = x * jax.nn.sigmoid(beta[0] * x)
    assert y.shape == x.shape and y.dtype == x.dtype
    assert jnp.allclose(y, y_ref, atol=1e-5, rtol=1e-5), float(jnp.max(jnp.abs(y - y_ref)))

    # Also exercise the lane-misaligned path (aligned prefix + plain-JAX tail).
    x2 = jax.random.normal(jax.random.PRNGKey(1), (3, 5, 45), dtype=jnp.float32)  # 675 elems
    y2 = jax.block_until_ready(pswish(x2, beta))
    y2_ref = x2 * jax.nn.sigmoid(beta[0] * x2)
    assert y2.shape == x2.shape and y2.dtype == x2.dtype
    assert jnp.allclose(y2, y2_ref, atol=1e-5, rtol=1e-5), float(jnp.max(jnp.abs(y2 - y2_ref)))

    print("KERNEL_OK")
</pallas_src>

<mosaic_0001>
module attributes {stable_mosaic.version = 11 : i64} {
  func.func @_pswish_kernel(%arg0: i32, %arg1: memref<1xf32, #tpu.memory_space<smem>>, %arg2: memref<16x128xf32, #tpu.memory_space<vmem>>, %arg3: memref<16x128xf32, #tpu.memory_space<vmem>>) attributes {dimension_semantics = [#tpu.dimension_semantics<parallel>], iteration_bounds = array<i64: 1>, scalar_prefetch = 0 : i64, scratch_operands = 0 : i64, tpu.core_type = #tpu.core_type<tc>, window_params = [{transform_indices = @transform_0, window_bounds = array<i64: 1>}, {transform_indices = @transform_1, window_bounds = array<i64: 16, 128>}, {transform_indices = @transform_2, window_bounds = array<i64: 16, 128>}]} {
    %c0 = arith.constant 0 : index
    %0 = memref.load %arg1[%c0] : memref<1xf32, #tpu.memory_space<smem>>
    %c0_0 = arith.constant 0 : index
    %c0_1 = arith.constant 0 : index
    %1 = vector.load %arg2[%c0_0, %c0_1] : memref<16x128xf32, #tpu.memory_space<vmem>>, vector<16x128xf32>
    %cst = arith.constant 5.000000e-01 : f32
    %2 = vector.broadcast %cst : f32 to vector<16x128xf32>
    %3 = arith.mulf %2, %1 : vector<16x128xf32>
    %cst_2 = arith.constant 5.000000e-01 : f32
    %4 = arith.mulf %cst_2, %0 : f32
    %5 = vector.broadcast %4 : f32 to vector<16x128xf32>
    %6 = arith.mulf %5, %1 : vector<16x128xf32>
    %7 = math.tanh %6 : vector<16x128xf32>
    %cst_3 = arith.constant 1.000000e+00 : f32
    %8 = vector.broadcast %cst_3 : f32 to vector<16x128xf32>
    %9 = arith.addf %8, %7 : vector<16x128xf32>
    %10 = arith.mulf %3, %9 : vector<16x128xf32>
    %c0_4 = arith.constant 0 : index
    %c0_5 = arith.constant 0 : index
    %11 = vector.load %arg3[%c0_4, %c0_5] : memref<16x128xf32, #tpu.memory_space<vmem>>, vector<16x128xf32>
    tpu.vector_store %arg3[%c0_4, %c0_5], %10 {strides = array<i32>} : memref<16x128xf32, #tpu.memory_space<vmem>>, vector<16x128xf32>,
    return
  }
  func.func @transform_0(%arg0: i32) -> i32 {
    %c0_i32 = arith.constant 0 : i32
    %c0_i32_0 = arith.constant 0 : i32
    return %c0_i32 : i32
  }
  func.func @transform_1(%arg0: i32) -> (i32, i32) {
    %c0_i32 = arith.constant 0 : i32
    %c0_i32_0 = arith.constant 0 : i32
    return %arg0, %c0_i32 : i32, i32
  }
  func.func @transform_2(%arg0: i32) -> (i32, i32) {
    %c0_i32 = arith.constant 0 : i32
    %c0_i32_0 = arith.constant 0 : i32
    return %arg0, %c0_i32 : i32, i32
  }
}

</mosaic_0001>

<llo_original>
// kernel: tpu_custom_call.1
$region0: #{tpu_custom_call.1}
  #allocation0 [shape = 'u32[]', space=smem, size = 0x4, offset = 0x4, fixed_abs, tag = 'smem constant byte address 0x4 - core index']
  #allocation1 [shape = 'u32[72,128]{1,0:T(1,128)}', space=vmem, size = 0x9000, scoped, tag = 'internal scratch']
  #allocation2 [shape = 'f32[1]{0:T(128)S(6)}', space=smem, size = 0x200, scoped, tag = 'scoped memory for tpu_custom_call.1']
  %s0 = inlined_call_operand.<no memory space> [shape: f32[1], index: 0, kind: input, shape index: {}]
  %s1 = inlined_call_operand.hbm [shape: f32[16,128], index: 1, kind: input, shape index: {}]
  %s2 = inlined_call_operand.hbm [shape: f32[16,128], index: 2, kind: output, shape index: {}]
  %s3 = sld [smem:[#allocation0]]
  $region22: #{tpu_custom_call.1} parent=0
    _
  %s5 = ssub.s32 1, %s3
  %s6 = scalar_select 0, %s5, %s3
  %7 = sst [smem:[#allocation2]] %s0
  $region1: #{tpu_custom_call.1} parent=0
    #allocation3 [shape = 'u8[8192]{0}', space=vmem, size = 0x2000, scoped, tag = 'input window, operand 1, single buffered']
    #allocation4 [shape = 's32[1]{0}', space=sflag, size = 0x4, scoped, tag = 'scoped memory for tpu_custom_call.1']
    #allocation5 [shape = 's32[1]{0}', space=sflag, size = 0x4, scoped, tag = 'scoped memory for tpu_custom_call.1']
    #allocation6 [shape = 'u8[8192]{0}', space=vmem, size = 0x2000, scoped, tag = 'output window, operand 0, single buffered']
    %8 = vsyncpa [#allocation4], 0
    %9 = vsyncpa [#allocation5], 0
    // Predicated region
    $region2: #{tpu_custom_call.1} parent=1 // pred_check
      _
    $region3: #{tpu_custom_call.1} parent=1 // pred_check_branch
      %11 = sbr.rel (0) target = $region5
    $region4: #{tpu_custom_call.1} parent=1 // pred_region
      _
    $region5: #{tpu_custom_call.1} parent=1 // pred_fallthru
      _
    // Predicated region
    $region6: #{tpu_custom_call.1} parent=1 // pred_check
      _
    $region7: #{tpu_custom_call.1} parent=1 // pred_check_branch
      %13 = sbr.rel (0) target = $region9
    $region8: #{tpu_custom_call.1} parent=1 // pred_region
      %15 = vsyncadd [#allocation4], 0
      %s16 = sshll.u32 %s1, 4
      %s17 = int_to_ptr.hbm [resolvable:$true] %s16
      %s18 = sshll.u32 [#allocation3], 4
      %s19 = int_to_ptr.vmem [resolvable:$true] %s18
      %24 = dma.hbm_to_vmem [thread:$0]  %s17, 256, %s19, [#allocation4], 128, 128, 8
    $region9: #{tpu_custom_call.1} parent=1 // pred_fallthru
      _
    // Predicated region
    $region10: #{tpu_custom_call.1} parent=1 // pred_check
      _
    $region11: #{tpu_custom_call.1} parent=1 // pred_check_branch
      %26 = sbr.rel (0) target = $region13
    $region12: #{tpu_custom_call.1} parent=1 // pred_region
      %28 = dma.done [#allocation4], 256
    $region13: #{tpu_custom_call.1} parent=1 // pred_fallthru
      _
    %s29 = sld [smem:[#allocation2]]
    %v30 = vld [vmem:[#allocation3] sm:$0xff]
    %v31 = vld [vmem:[#allocation3 + $0x8] sm:$0xff]
    %v32 = vmul.f32 %v30, 0.5
    %v33 = vmul.f32 %v31, 0.5
    %s34 = smul.f32 %s29, 0.5
    %v35 = vstv %s34
    %v36 = vmul.f32 %v35, %v30
    %v37 = vmul.f32 %v35, %v31
    %v38 = vtanh.pop %v36
    %v39 = vtanh.pop %v37
    %v40 = vadd.f32 %v38, 1.0
    %v41 = vadd.f32 %v39, 1.0
    %v42 = vmul.f32 %v32, %v40
    %v43 = vmul.f32 %v33, %v41
    %44 = vst [vmem:[#allocation6] sm:$0xff] %v42
    %45 = vst [vmem:[#allocation6 + $0x8] sm:$0xff] %v43
    // Predicated region
    $region14: #{tpu_custom_call.1} parent=1 // pred_check
      _
    $region15: #{tpu_custom_call.1} parent=1 // pred_check_branch
      %47 = sbr.rel (0) target = $region17
    $region16: #{tpu_custom_call.1} parent=1 // pred_region
      %49 = vsyncadd [#allocation5], 0
      %s50 = sshll.u32 [#allocation6], 4
      %s51 = int_to_ptr.vmem [resolvable:$true] %s50
      %s52 = sshll.u32 %s2, 4
      %s53 = int_to_ptr.hbm [resolvable:$true] %s52
      %58 = dma.vmem_to_hbm [thread:$0]  %s51, 256, %s53, [#allocation5], 128, 128, 8
    $region17: #{tpu_custom_call.1} parent=1 // pred_fallthru
      _
    // Predicated region
    $region18: #{tpu_custom_call.1} parent=1 // pred_check
      _
    $region19: #{tpu_custom_call.1} parent=1 // pred_check_branch
      %60 = sbr.rel (0) target = $region21
    $region20: #{tpu_custom_call.1} parent=1 // pred_region
      %62 = dma.done [#allocation5], 256
    $region21: #{tpu_custom_call.1} parent=1 // pred_fallthru
      _
    %63 = vsyncpa [#allocation4], 1
    %64 = vsyncpa [#allocation5], 1

</llo_original>
